<compile_context>
chip_gen: v7x
topology: tpu7x:2x2x1
jax: 0.10.0
libtpu: 0.0.40
codegen_flags: <defaults>
</compile_context>

<pallas_src>
import jax
import jax.numpy as jnp
from jax.experimental import pallas as pl
from jax.experimental.pallas import tpu as pltpu

LANE = 128                     # vreg lane width: keep last dim lane-dense
MAX_TILE_ROWS = 4096           # up to 2 MiB (f32) / 1 MiB (bf16) per input block
MIN_PALLAS_ELEMS = 64 * LANE   # below this, pure XLA beats kernel launch cost


def _round_up(x, m):
    return -(-x // m) * m


def _sublane_min(dtype):
    # Native packed tile: (8,128) for 32-bit, (16,128) for 16-bit, (32,128) for 8-bit.
    return max(8, 32 // jnp.dtype(dtype).itemsize)


def _make_eu_kernel(tile_rows, rows_valid, needs_mask):
    fold = tile_rows // 8

    def kernel(src_ref, tgt_ref, acc_ref):
        # acc_ref is the (8,128) output block; its block index is fixed across
        # the single "arbitrary" grid axis, so it stays resident in VMEM and
        # acts as the accumulator.
        @pl.when(pl.program_id(0) == 0)
        def _init():
            acc_ref[...] = jnp.zeros_like(acc_ref)

        d = src_ref[...].astype(jnp.float32) - tgt_ref[...].astype(jnp.float32)
        sq = d * d
        if needs_mask:
            # Ragged tail: rows >= rows_valid in the last block hold undefined
            # (not-DMA'd) data; zero their contribution.  Cheap VPU work on a
            # purely HBM-bound kernel.
            row0 = pl.program_id(0) * tile_rows
            row_ids = jax.lax.broadcasted_iota(
                jnp.int32, (tile_rows, LANE), 0) + row0
            sq = jnp.where(row_ids < rows_valid, sq, 0.0)

        # Fold (tile_rows,128) -> (8,128): the reshape groups exactly one
        # native (8,128) f32 tile per slice, so the axis-0 sum lowers to pure
        # cross-vreg VPU adds (no per-step cross-lane/XLU reduce).
        acc_ref[...] += jnp.sum(sq.reshape(fold, 8, LANE), axis=0)

    return kernel


def attention_forward(src_sen_emb, tgt_sen_emb, emb_dim):
    """Mirrors attention.forward((src_sen_emb, tgt_sen_emb))."""
    # .view(-1, 1, emb_dim) followed by .squeeze()  ->  [B, emb_dim] (free reshapes)
    src = src_sen_emb.reshape(-1, emb_dim)
    tgt = tgt_sen_emb.reshape(-1, emb_dim)
    b = src.shape[0]                      # logical batch: dis.size()[0]
    total = b * emb_dim
    scale = 100.0 / b

    # Tiny or lane-ragged totals: pure-XLA path (kernel launch / repack not
    # worth it, and it keeps the Pallas path free of wrapper-side pad copies).
    if total % LANE != 0 or total < MIN_PALLAS_ELEMS:
        d = src.astype(jnp.float32) - tgt.astype(jnp.float32)
        return src, tgt, jnp.sum(d * d) * scale

    rows = total // LANE
    sub_min = max(_sublane_min(src.dtype), _sublane_min(tgt.dtype))
    tile_rows = min(MAX_TILE_ROWS, _round_up(rows, sub_min))
    steps = -(-rows // tile_rows)
    needs_mask = (rows % tile_rows) != 0

    # Zero-copy lane-dense views: row-major contiguous reshape, no pad pass.
    src_ld = src.reshape(rows, LANE)
    tgt_ld = tgt.reshape(rows, LANE)

    in_spec = pl.BlockSpec((tile_rows, LANE), lambda i: (i, 0))

    # TODO(synk): on v7x, add a leading CORE_PARALLEL axis with 2 per-core
    # partial accumulator blocks to split the sweep across both TensorCores.
    acc = pl.pallas_call(
        _make_eu_kernel(tile_rows, rows, needs_mask),
        out_shape=jax.ShapeDtypeStruct((8, LANE), jnp.float32),
        grid_spec=pltpu.PrefetchScalarGridSpec(
            num_scalar_prefetch=0,
            grid=(steps,),
            in_specs=[in_spec, in_spec],
            out_specs=pl.BlockSpec((8, LANE), lambda i: (0, 0)),
        ),
        compiler_params=pltpu.CompilerParams(
            dimension_semantics=("arbitrary",),
            vmem_limit_bytes=32 * 1024 * 1024,
        ),
    )(src_ld, tgt_ld)

    # Tiny finalize: one 4 KiB cross-lane reduce + the single 100/B scale.
    loss = jnp.sum(acc) * scale
    return src, tgt, loss


def _reference_loss(src, tgt):
    ans = src - tgt
    dis = jnp.sum(ans * ans, axis=-1)
    return jnp.sum(100.0 * dis / dis.shape[0])


if __name__ == "__main__":
    emb_dim = 32
    key = jax.random.PRNGKey(0)
    keys = jax.random.split(key, 8)

    def check(src_in, tgt_in, rtol=1e-5, atol=1e-3):
        s, t, loss = attention_forward(src_in, tgt_in, emb_dim)
        jax.block_until_ready((s, t, loss))
        src2 = src_in.reshape(-1, emb_dim).astype(jnp.float32)
        tgt2 = tgt_in.reshape(-1, emb_dim).astype(jnp.float32)
        ref = _reference_loss(src2, tgt2)
        assert s.shape == (src2.shape[0], emb_dim)
        assert t.shape == (tgt2.shape[0], emb_dim)
        assert jnp.allclose(loss, ref, rtol=rtol, atol=atol), (loss, ref)

    # 1) tiny batch, matching the module's (..,1,emb_dim) view -> pure-XLA
    #    short-circuit path (semantics check).
    check(jax.random.normal(keys[0], (8, 1, emb_dim), jnp.float32),
          jax.random.normal(keys[1], (8, 1, emb_dim), jnp.float32))

    # 2) small batch through the Pallas kernel (single full (128,128) tile).
    check(jax.random.normal(keys[2], (512, emb_dim), jnp.float32),
          jax.random.normal(keys[3], (512, emb_dim), jnp.float32))

    # 3) ragged row count -> exercises the in-kernel iota mask on a partial block.
    check(jax.random.normal(keys[4], (8200, emb_dim), jnp.float32),
          jax.random.normal(keys[5], (8200, emb_dim), jnp.float32), rtol=1e-4)

    # 4) bf16 inputs, multi-step accumulation (4 grid steps of (4096,128) tiles).
    check(jax.random.normal(keys[6], (65536, emb_dim)).astype(jnp.bfloat16),
          jax.random.normal(keys[7], (65536, emb_dim)).astype(jnp.bfloat16),
          rtol=2e-3, atol=1e-1)

    print("KERNEL_OK")
</pallas_src>

<mosaic_0001>
module attributes {stable_mosaic.version = 11 : i64} {
  func.func @kernel(%arg0: i32, %arg1: memref<128x128xf32, #tpu.memory_space<vmem>>, %arg2: memref<128x128xf32, #tpu.memory_space<vmem>>, %arg3: memref<8x128xf32, #tpu.memory_space<vmem>>) attributes {dimension_semantics = [#tpu.dimension_semantics<arbitrary>], iteration_bounds = array<i64: 1>, scalar_prefetch = 0 : i64, scratch_operands = 0 : i64, tpu.core_type = #tpu.core_type<tc>, window_params = [{transform_indices = @transform_0, window_bounds = array<i64: 128, 128>}, {transform_indices = @transform_1, window_bounds = array<i64: 128, 128>}, {pipeline_mode = #tpu.pipeline_mode<synchronous>, transform_indices = @transform_2, window_bounds = array<i64: 8, 128>}]} {
    %c0_i32 = arith.constant 0 : i32
    %0 = arith.cmpi eq, %arg0, %c0_i32 : i32
    %1 = arith.extui %0 : i1 to i32
    %c0_i32_0 = arith.constant 0 : i32
    %2 = arith.cmpi ne, %1, %c0_i32_0 : i32
    scf.if %2 {
      %cst_8 = arith.constant 0.000000e+00 : f32
      %12 = vector.broadcast %cst_8 : f32 to vector<8x128xf32>
      %c0_9 = arith.constant 0 : index
      %c0_10 = arith.constant 0 : index
      %13 = vector.load %arg3[%c0_9, %c0_10] : memref<8x128xf32, #tpu.memory_space<vmem>>, vector<8x128xf32>
      tpu.vector_store %arg3[%c0_9, %c0_10], %12 {strides = array<i32>} : memref<8x128xf32, #tpu.memory_space<vmem>>, vector<8x128xf32>,
    } else {
    }
    %c0 = arith.constant 0 : index
    %c0_1 = arith.constant 0 : index
    %3 = vector.load %arg1[%c0, %c0_1] : memref<128x128xf32, #tpu.memory_space<vmem>>, vector<128x128xf32>
    %c0_2 = arith.constant 0 : index
    %c0_3 = arith.constant 0 : index
    %4 = vector.load %arg2[%c0_2, %c0_3] : memref<128x128xf32, #tpu.memory_space<vmem>>, vector<128x128xf32>
    %5 = arith.subf %3, %4 : vector<128x128xf32>
    %6 = arith.mulf %5, %5 : vector<128x128xf32>
    %c0_4 = arith.constant 0 : index
    %c0_5 = arith.constant 0 : index
    %7 = vector.load %arg3[%c0_4, %c0_5] : memref<8x128xf32, #tpu.memory_space<vmem>>, vector<8x128xf32>
    %8 = vector.shape_cast %6 : vector<128x128xf32> to vector<16x8x128xf32>
    %cst = arith.constant dense<0.000000e+00> : vector<8x128xf32>
    %9 = vector.multi_reduction <add>, %8, %cst [0] : vector<16x8x128xf32> to vector<8x128xf32>
    %10 = arith.addf %7, %9 : vector<8x128xf32>
    %c0_6 = arith.constant 0 : index
    %c0_7 = arith.constant 0 : index
    %11 = vector.load %arg3[%c0_6, %c0_7] : memref<8x128xf32, #tpu.memory_space<vmem>>, vector<8x128xf32>
    tpu.vector_store %arg3[%c0_6, %c0_7], %10 {strides = array<i32>} : memref<8x128xf32, #tpu.memory_space<vmem>>, vector<8x128xf32>,
    return
  }
  func.func @transform_0(%arg0: i32) -> (i32, i32) {
    %c0_i32 = arith.constant 0 : i32
    %c0_i32_0 = arith.constant 0 : i32
    return %arg0, %c0_i32 : i32, i32
  }
  func.func @transform_1(%arg0: i32) -> (i32, i32) {
    %c0_i32 = arith.constant 0 : i32
    %c0_i32_0 = arith.constant 0 : i32
    return %arg0, %c0_i32 : i32, i32
  }
  func.func @transform_2(%arg0: i32) -> (i32, i32) {
    %c0_i32 = arith.constant 0 : i32
    %c0_i32_0 = arith.constant 0 : i32
    %c0_i32_1 = arith.constant 0 : i32
    return %c0_i32, %c0_i32_0 : i32, i32
  }
}

</mosaic_0001>

<llo_original>
// kernel: tpu_custom_call.1
$region0: #{tpu_custom_call.1}
  #allocation0 [shape = 'u32[]', space=smem, size = 0x4, offset = 0x4, fixed_abs, tag = 'smem constant byte address 0x4 - core index']
  #allocation1 [shape = 'u32[144,128]{1,0:T(1,128)}', space=vmem, size = 0x12000, scoped, tag = 'internal scratch']
  %s0 = inlined_call_operand.hbm [shape: f32[128,128], index: 0, kind: input, shape index: {}]
  %s1 = inlined_call_operand.hbm [shape: f32[128,128], index: 1, kind: input, shape index: {}]
  %s2 = inlined_call_operand.hbm [shape: f32[8,128], index: 2, kind: output, shape index: {}]
  %s3 = sld [smem:[#allocation0]]
  $region30: #{tpu_custom_call.1} parent=0
    _
  %s5 = ssub.s32 1, %s3
  %s6 = scalar_select 0, %s5, %s3
  $region1: #{tpu_custom_call.1} parent=0
    #allocation2 [shape = 'u8[65536]{0}', space=vmem, size = 0x10000, scoped, tag = 'input window, operand 0, single buffered']
    #allocation3 [shape = 's32[1]{0}', space=sflag, size = 0x4, scoped, tag = 'scoped memory for tpu_custom_call.1']
    #allocation4 [shape = 's32[1]{0}', space=sflag, size = 0x4, scoped, tag = 'scoped memory for tpu_custom_call.1']
    #allocation5 [shape = 'u8[65536]{0}', space=vmem, size = 0x10000, scoped, tag = 'input window, operand 1, single buffered']
    #allocation6 [shape = 's32[1]{0}', space=sflag, size = 0x4, scoped, tag = 'scoped memory for tpu_custom_call.1']
    #allocation7 [shape = 'u8[4096]{0}', space=vmem, size = 0x1000, scoped, tag = 'output window, operand 0, single buffered']
    %7 = vsyncpa [#allocation3], 0
    %8 = vsyncpa [#allocation6], 0
    %9 = vsyncpa [#allocation4], 0
    // Predicated region
    $region2: #{tpu_custom_call.1} parent=1 // pred_check
      _
    $region3: #{tpu_custom_call.1} parent=1 // pred_check_branch
      %11 = sbr.rel (0) target = $region5
    $region4: #{tpu_custom_call.1} parent=1 // pred_region
      %s13 = ssub.s32 2048, 2048
      %14 = vsyncadd [#allocation3], %s13
      %s15 = sshll.u32 [#allocation2], 4
      %s16 = int_to_ptr.vmem [resolvable:$true] %s15
      %21 = dma.hbm_to_vmem [thread:$0]  %s0, 2048, %s16, [#allocation3], 128, 128, 8
    $region5: #{tpu_custom_call.1} parent=1 // pred_fallthru
      _
    // Predicated region
    $region6: #{tpu_custom_call.1} parent=1 // pred_check
      _
    $region7: #{tpu_custom_call.1} parent=1 // pred_check_branch
      %23 = sbr.rel (0) target = $region9
    $region8: #{tpu_custom_call.1} parent=1 // pred_region
      %s25 = ssub.s32 2048, 2048
      %26 = vsyncadd [#allocation6], %s25
      %s27 = sshll.u32 [#allocation5], 4
      %s28 = int_to_ptr.vmem [resolvable:$true] %s27
      %33 = dma.hbm_to_vmem [thread:$0]  %s1, 2048, %s28, [#allocation6], 128, 128, 8
    $region9: #{tpu_custom_call.1} parent=1 // pred_fallthru
      _
    // Predicated region
    $region10: #{tpu_custom_call.1} parent=1 // pred_check
      _
    $region11: #{tpu_custom_call.1} parent=1 // pred_check_branch
      %35 = sbr.rel (0) target = $region13
    $region12: #{tpu_custom_call.1} parent=1 // pred_region
      %36 = dma.done [#allocation3], 2048
    $region13: #{tpu_custom_call.1} parent=1 // pred_fallthru
      _
    // Predicated region
    $region14: #{tpu_custom_call.1} parent=1 // pred_check
      _
    $region15: #{tpu_custom_call.1} parent=1 // pred_check_branch
      %38 = sbr.rel (0) target = $region17
    $region16: #{tpu_custom_call.1} parent=1 // pred_region
      %39 = dma.done [#allocation6], 2048
    $region17: #{tpu_custom_call.1} parent=1 // pred_fallthru
      _
    %p40 = scmp.eq.s32.totalorder 0, 0
    // Predicated region
    $region18: #{tpu_custom_call.1} parent=1 // pred_check
      %p41 = pneg %p40
    $region19: #{tpu_custom_call.1} parent=1 // pred_check_branch
      %43 = sbr.rel (%p41) target = $region21
    $region20: #{tpu_custom_call.1} parent=1 // pred_region
      %44 = vst [vmem:[#allocation7] sm:$0xff] 0.0
    $region21: #{tpu_custom_call.1} parent=1 // pred_fallthru
      _
    %v45 = vld [vmem:[#allocation2] sm:$0xff]
    %v46 = vld [vmem:[#allocation2 + $0x8] sm:$0xff]
    %v47 = vld [vmem:[#allocation2 + $0x10] sm:$0xff]
    %v48 = vld [vmem:[#allocation2 + $0x18] sm:$0xff]
    %v49 = vld [vmem:[#allocation2 + $0x20] sm:$0xff]
    %v50 = vld [vmem:[#allocation2 + $0x28] sm:$0xff]
    %v51 = vld [vmem:[#allocation2 + $0x30] sm:$0xff]
    %v52 = vld [vmem:[#allocation2 + $0x38] sm:$0xff]
    %v53 = vld [vmem:[#allocation2 + $0x40] sm:$0xff]
    %v54 = vld [vmem:[#allocation2 + $0x48] sm:$0xff]
    %v55 = vld [vmem:[#allocation2 + $0x50] sm:$0xff]
    %v56 = vld [vmem:[#allocation2 + $0x58] sm:$0xff]
    %v57 = vld [vmem:[#allocation2 + $0x60] sm:$0xff]
    %v58 = vld [vmem:[#allocation2 + $0x68] sm:$0xff]
    %v59 = vld [vmem:[#allocation2 + $0x70] sm:$0xff]
    %v60 = vld [vmem:[#allocation2 + $0x78] sm:$0xff]
    %v61 = vld [vmem:[#allocation5] sm:$0xff]
    %v62 = vld [vmem:[#allocation5 + $0x8] sm:$0xff]
    %v63 = vld [vmem:[#allocation5 + $0x10] sm:$0xff]
    %v64 = vld [vmem:[#allocation5 + $0x18] sm:$0xff]
    %v65 = vld [vmem:[#allocation5 + $0x20] sm:$0xff]
    %v66 = vld [vmem:[#allocation5 + $0x28] sm:$0xff]
    %v67 = vld [vmem:[#allocation5 + $0x30] sm:$0xff]
    %v68 = vld [vmem:[#allocation5 + $0x38] sm:$0xff]
    %v69 = vld [vmem:[#allocation5 + $0x40] sm:$0xff]
    %v70 = vld [vmem:[#allocation5 + $0x48] sm:$0xff]
    %v71 = vld [vmem:[#allocation5 + $0x50] sm:$0xff]
    %v72 = vld [vmem:[#allocation5 + $0x58] sm:$0xff]
    %v73 = vld [vmem:[#allocation5 + $0x60] sm:$0xff]
    %v74 = vld [vmem:[#allocation5 + $0x68] sm:$0xff]
    %v75 = vld [vmem:[#allocation5 + $0x70] sm:$0xff]
    %v76 = vld [vmem:[#allocation5 + $0x78] sm:$0xff]
    %v77 = vsub.f32 %v45, %v61
    %v78 = vsub.f32 %v46, %v62
    %v79 = vsub.f32 %v47, %v63
    %v80 = vsub.f32 %v48, %v64
    %v81 = vsub.f32 %v49, %v65
    %v82 = vsub.f32 %v50, %v66
    %v83 = vsub.f32 %v51, %v67
    %v84 = vsub.f32 %v52, %v68
    %v85 = vsub.f32 %v53, %v69
    %v86 = vsub.f32 %v54, %v70
    %v87 = vsub.f32 %v55, %v71
    %v88 = vsub.f32 %v56, %v72
    %v89 = vsub.f32 %v57, %v73
    %v90 = vsub.f32 %v58, %v74
    %v91 = vsub.f32 %v59, %v75
    %v92 = vsub.f32 %v60, %v76
    %v93 = vmul.f32 %v77, %v77
    %v94 = vmul.f32 %v78, %v78
    %v95 = vmul.f32 %v79, %v79
    %v96 = vmul.f32 %v80, %v80
    %v97 = vmul.f32 %v81, %v81
    %v98 = vmul.f32 %v82, %v82
    %v99 = vmul.f32 %v83, %v83
    %v100 = vmul.f32 %v84, %v84
    %v101 = vmul.f32 %v85, %v85
    %v102 = vmul.f32 %v86, %v86
    %v103 = vmul.f32 %v87, %v87
    %v104 = vmul.f32 %v88, %v88
    %v105 = vmul.f32 %v89, %v89
    %v106 = vmul.f32 %v90, %v90
    %v107 = vmul.f32 %v91, %v91
    %v108 = vmul.f32 %v92, %v92
    %v109 = vld [vmem:[#allocation7] sm:$0xff]
    %v110 = vadd.f32 %v93, %v94
    %v111 = vadd.f32 %v110, %v95
    %v112 = vadd.f32 %v111, %v96
    %v113 = vadd.f32 %v112, %v97
    %v114 = vadd.f32 %v113, %v98
    %v115 = vadd.f32 %v114, %v99
    %v116 = vadd.f32 %v115, %v100
    %v117 = vadd.f32 %v116, %v101
    %v118 = vadd.f32 %v117, %v102
    %v119 = vadd.f32 %v118, %v103
    %v120 = vadd.f32 %v119, %v104
    %v121 = vadd.f32 %v120, %v105
    %v122 = vadd.f32 %v121, %v106
    %v123 = vadd.f32 %v122, %v107
    %v124 = vadd.f32 %v123, %v108
    %v125 = vadd.f32 %v109, %v124
    %126 = vst [vmem:[#allocation7] sm:$0xff] %v125
    // Predicated region
    $region22: #{tpu_custom_call.1} parent=1 // pred_check
      _
    $region23: #{tpu_custom_call.1} parent=1 // pred_check_branch
      %128 = sbr.rel (0) target = $region25
    $region24: #{tpu_custom_call.1} parent=1 // pred_region
      %s130 = ssub.s32 128, 128
      %131 = vsyncadd [#allocation4], %s130
      %s133 = sshll.u32 [#allocation7], 4
      %s134 = int_to_ptr.vmem [resolvable:$true] %s133
      %136 = dma.vmem_to_hbm [thread:$0]  %s134, 128, %s2, [#allocation4]
    $region25: #{tpu_custom_call.1} parent=1 // pred_fallthru
      _
    // Predicated region
    $region26: #{tpu_custom_call.1} parent=1 // pred_check
      _
    $region27: #{tpu_custom_call.1} parent=1 // pred_check_branch
      %138 = sbr.rel (0) target = $region29
    $region28: #{tpu_custom_call.1} parent=1 // pred_region
      %139 = dma.done [#allocation4], 128
    $region29: #{tpu_custom_call.1} parent=1 // pred_fallthru
      _
    %140 = vsyncpa [#allocation3], 1
    %141 = vsyncpa [#allocation6], 1
    %142 = vsyncpa [#allocation4], 1

</llo_original>
